<compile_context>
chip_gen: v7x
topology: tpu7x:2x2x1
jax: 0.10.0
libtpu: 0.0.40
codegen_flags: <defaults>
</compile_context>

<pallas_src>
import functools
import numpy as np
import jax
import jax.numpy as jnp
from jax import lax
from jax.experimental import pallas as pl
from jax.experimental.pallas import tpu as pltpu


_SQRT_2_OVER_PI = 0.7978845608028654


def _gelu(x):
    # tanh-form GELU: one EUP tanh + a few VPU ops; <=~3e-4 absolute deviation
    # from the exact erf-based torch.nn.GELU.
    return 0.5 * x * (1.0 + jnp.tanh(_SQRT_2_OVER_PI * (x + 0.044715 * (x * x * x))))


def _sigmoid(x):
    # Numerically stable, EUP-routed sigmoid (no VPU divide).
    return 0.5 * (jnp.tanh(0.5 * x) + 1.0)


def _round_up8(n):
    return (n + 7) // 8 * 8


# -----------------------------------------------------------------------------
# One-time host-side packing of every weight/bias into a single lane-padded
# f32 slab.  Matrices are stored (in_features, out_features) starting at lane 0
# at 8-row-aligned offsets; all bias rows (plus the folded w4-difference row)
# live in one 8-row block at the bottom.
# -----------------------------------------------------------------------------
def pack_params(params, *, tau=5.0):
    f32 = lambda a: np.asarray(a, dtype=np.float32)
    w1, w2, w3 = f32(params["w1"]), f32(params["w2"]), f32(params["w3"])
    wm1, wm2 = f32(params["wm1"]), f32(params["wm2"])
    Fin, D = w1.shape
    C, M = w2.shape
    H = wm1.shape[1]
    inv_tau = 1.0 / float(tau)
    w4, b4 = f32(params["w4"]), f32(params["b4"])
    w4_diff = (w4[:, 0] - w4[:, 1]) * inv_tau                     # (M,) lane-dense row

    mats = (("w1", w1), ("w2", w2), ("w3", w3), ("wm1", wm1), ("wm2", wm2))
    row, r = {}, 0
    for name, m in mats:
        row[name] = r
        r += _round_up8(m.shape[0])
    row["vec"] = r
    vec_rows = (f32(params["b1"]), f32(params["b2"]), f32(params["b3"]),
                f32(params["bm1"]), f32(params["bn_gamma"]), f32(params["bn_beta"]),
                f32(params["bm2"]), w4_diff)
    assert len(vec_rows) == 8
    r += 8

    lane_width = 128
    assert max(m.shape[1] for _, m in mats) <= lane_width
    slab = np.zeros((r, lane_width), np.float32)
    for name, m in mats:
        slab[row[name]:row[name] + m.shape[0], :m.shape[1]] = m
    for i, v in enumerate(vec_rows):
        slab[row["vec"] + i, :v.shape[0]] = v

    dims = dict(Fin=Fin, D=D, C=C, M=M, H=H)
    consts = dict(inv_tau=inv_tau, b4_diff_scaled=float((b4[0] - b4[1]) * inv_tau))
    return jnp.asarray(slab), row, dims, consts


# -----------------------------------------------------------------------------
# Single fused kernel (no grid): mask processor + main transmitter path.
# -----------------------------------------------------------------------------
def _make_kernel(B, C, Fin, D, M, H, row):
    r_w1, r_w2, r_w3 = row["w1"], row["w2"], row["w3"]
    r_wm1, r_wm2, r_vec = row["wm1"], row["wm2"], row["vec"]

    def kernel(x_ref, mb_ref, slab_ref, out_ref):
        # ---- carve packed parameter slab (static slices, zero extra DMAs) --
        w1 = slab_ref[r_w1:r_w1 + Fin, 0:D]
        w2 = slab_ref[r_w2:r_w2 + C, 0:M]
        w3 = slab_ref[r_w3:r_w3 + D, 0:D]
        wm1 = slab_ref[r_wm1:r_wm1 + D, 0:H]
        wm2 = slab_ref[r_wm2:r_wm2 + H, 0:M]
        vecs = slab_ref[r_vec:r_vec + 8, :]
        b1, b2, b3 = vecs[0:1, 0:D], vecs[1:2, 0:M], vecs[2:3, 0:D]
        bm1, gamma, beta = vecs[3:4, 0:H], vecs[4:5, 0:H], vecs[5:6, 0:H]
        bm2, w4d = vecs[6:7, 0:M], vecs[7:8, 0:M]

        mb = mb_ref[...]                 # rows 0..B-1: mask, B..2B-1: folded gumbel bias
        mask = mb[0:B, :]                # (B, D)

        # ---- mask processor: Linear -> BatchNorm1d (batch stats) -> GELU -> Linear
        hm = jnp.dot(mask, wm1, preferred_element_type=jnp.float32) + bm1       # (B, H)
        mu = jnp.mean(hm, axis=0, keepdims=True)
        var = jnp.mean((hm - mu) * (hm - mu), axis=0, keepdims=True)            # biased var
        hn = (hm - mu) * lax.rsqrt(var + 1e-5) * gamma + beta
        pm = jnp.dot(_gelu(hn), wm2, preferred_element_type=jnp.float32) + bm2  # (B, M)

        # ---- main path ------------------------------------------------------
        x = x_ref[...].reshape(B * C, Fin)
        h1 = _gelu(jnp.dot(x, w1, preferred_element_type=jnp.float32) + b1)     # (B*C, D)

        rows = []
        for b in range(B):               # B is tiny & static -> unrolled, no control overhead
            h1_b = h1[b * C:(b + 1) * C, :]                                      # (C, D)
            # Linear(C->M): contraction over the sublane axis of the activation
            # (transpose folded into the MXU operand feed, no relayout copy).
            h2_b = lax.dot_general(h1_b, w2, (((0,), (0,)), ((), ())),
                                   preferred_element_type=jnp.float32)           # (D, M)
            h2_b = h2_b + b2 + pm[b:b + 1, :]
            # Linear(D->D): again contraction over the sublane axis.
            h3_b = _gelu(lax.dot_general(h2_b, w3, (((0,), (0,)), ((), ())),
                                         preferred_element_type=jnp.float32) + b3)  # (M, D)
            # Linear(M->2) + soft 2-class Gumbel-softmax == sigmoid(logit diff);
            # lane-dense (1, M) @ (M, D) matvec.
            diff = jnp.dot(w4d, h3_b, preferred_element_type=jnp.float32)        # (1, D)
            rows.append(_sigmoid(diff + mb[B + b:B + b + 1, :]))
        out_ref[...] = jnp.concatenate(rows, axis=0)                             # (B, D)

    return kernel


# -----------------------------------------------------------------------------
# Wrapper (jitted by the caller so the rearrange can fuse into the Pallas call).
# -----------------------------------------------------------------------------
def channel_transformer_transmitter_forward(input_tensor, mask, gumbel_noise, slab,
                                             *, row, dims, consts):
    B, n_rx, n_tx, C, _ = input_tensor.shape
    Fin, D, M, H = dims["Fin"], dims["D"], dims["M"], dims["H"]
    assert Fin == n_rx * n_tx * 2 and C == dims["C"]

    # 'b nrx ntx c complex -> b c (nrx ntx complex)'.  Kept as one tiny XLA
    # transpose; allow_input_fusion lets XLA fold it into the operand fetch.
    x = jnp.transpose(input_tensor, (0, 3, 1, 2, 4)).reshape(B, C, Fin)

    # Fold Gumbel noise, b4 difference and 1/tau into one per-(b, d) bias row
    # and stack it with the mask -> a single small operand.
    bias_noise = (gumbel_noise[..., 0] - gumbel_noise[..., 1]) * consts["inv_tau"] \
        + consts["b4_diff_scaled"]
    mb = jnp.concatenate([mask.astype(jnp.float32), bias_noise.astype(jnp.float32)],
                         axis=0)                                                # (2B, D)

    kernel = _make_kernel(B, C, Fin, D, M, H, row)
    return pl.pallas_call(
        kernel,
        out_shape=jax.ShapeDtypeStruct((B, D), jnp.float32),
        compiler_params=pltpu.CompilerParams(
            allow_input_fusion=[True, False, False]),
    )(x, mb, slab)


# -----------------------------------------------------------------------------
# Deterministic parameter init (weights stored as (in, out), i.e. transposed
# relative to torch.nn.Linear's (out, in)).
# -----------------------------------------------------------------------------
def init_params(key, n_tx, n_rx, n_carrier, dim_feedback):
    Fin = n_tx * n_rx * 2

    def lin(k, fan_in, fan_out):
        kw, kb = jax.random.split(k)
        lim = 1.0 / float(np.sqrt(fan_in))
        w = jax.random.uniform(kw, (fan_in, fan_out), jnp.float32, -lim, lim)
        b = jax.random.uniform(kb, (fan_out,), jnp.float32, -lim, lim)
        return w, b

    keys = jax.random.split(key, 6)
    w1, b1 = lin(keys[0], Fin, dim_feedback)
    w2, b2 = lin(keys[1], n_carrier, 32)
    w3, b3 = lin(keys[2], dim_feedback, dim_feedback)
    w4, b4 = lin(keys[3], 32, 2)
    wm1, bm1 = lin(keys[4], dim_feedback, 64)
    wm2, bm2 = lin(keys[5], 64, 32)
    return dict(w1=w1, b1=b1, w2=w2, b2=b2, w3=w3, b3=b3, w4=w4, b4=b4,
                wm1=wm1, bm1=bm1, wm2=wm2, bm2=bm2,
                bn_gamma=jnp.ones((64,), jnp.float32),
                bn_beta=jnp.zeros((64,), jnp.float32))


# -----------------------------------------------------------------------------
# Pure-JAX reference (exact erf-GELU, full 2-class softmax path) for validation.
# -----------------------------------------------------------------------------
def reference_forward(input_tensor, mask, gumbel_noise, params, *, tau=5.0):
    B, n_rx, n_tx, C, _ = input_tensor.shape
    gelu = lambda v: jax.nn.gelu(v, approximate=False)
    x = jnp.transpose(input_tensor, (0, 3, 1, 2, 4)).reshape(B, C, -1)
    x = gelu(x @ params["w1"] + params["b1"])
    x = jnp.swapaxes(x, 1, 2)
    x = x @ params["w2"] + params["b2"]
    h = mask @ params["wm1"] + params["bm1"]
    mu = h.mean(axis=0, keepdims=True)
    var = ((h - mu) ** 2).mean(axis=0, keepdims=True)
    hn = (h - mu) / jnp.sqrt(var + 1e-5) * params["bn_gamma"] + params["bn_beta"]
    pm = gelu(hn) @ params["wm2"] + params["bm2"]
    x = x + pm[:, None, :]
    x = jnp.swapaxes(x, 1, 2)
    x = gelu(x @ params["w3"] + params["b3"])
    x = jnp.swapaxes(x, 1, 2)
    logits = x @ params["w4"] + params["b4"]              # (B, D, 2)
    z = (logits + gumbel_noise) / tau
    y = jax.nn.softmax(z, axis=-1)
    return y[:, :, 0]


if __name__ == "__main__":
    B, n_tx, n_rx, n_carrier, dim_feedback = 2, 2, 2, 16, 32
    tau = 5.0
    key = jax.random.PRNGKey(0)
    k_in, k_mask, k_g, k_p = jax.random.split(key, 4)

    params = init_params(k_p, n_tx, n_rx, n_carrier, dim_feedback)
    input_tensor = jax.random.normal(k_in, (B, n_rx, n_tx, n_carrier, 2), jnp.float32)
    mask = jax.random.normal(k_mask, (B, dim_feedback), jnp.float32)
    # Gumbel(0,1) noise for the relaxation, in the logits' natural (B, D, 2) layout.
    gumbel_noise = jax.random.gumbel(k_g, (B, dim_feedback, 2), jnp.float32)

    slab, row, dims, consts = pack_params(params, tau=tau)
    fwd = jax.jit(functools.partial(channel_transformer_transmitter_forward,
                                    row=row, dims=dims, consts=consts))

    out = jax.block_until_ready(fwd(input_tensor, mask, gumbel_noise, slab))

    ref = reference_forward(input_tensor, mask, gumbel_noise, params, tau=tau)
    assert out.shape == (B, dim_feedback), out.shape
    # 2e-3 tolerance: tanh-form GELU (vs exact erf GELU of nn.GELU) plus EUP
    # transcendentals contribute <= ~5e-4 absolute at the sigmoid output.
    if not np.allclose(np.asarray(out), np.asarray(ref), rtol=2e-3, atol=2e-3):
        err = float(np.max(np.abs(np.asarray(out) - np.asarray(ref))))
        raise AssertionError(f"Pallas kernel output mismatch, max|err|={err:.3e}")
    print("KERNEL_OK")
</pallas_src>

<mosaic_0001>
module attributes {stable_mosaic.version = 11 : i64} {
  func.func @kernel(%arg0: memref<2x16x8xf32, #tpu.memory_space<vmem>>, %arg1: memref<4x32xf32, #tpu.memory_space<vmem>>, %arg2: memref<160x128xf32, #tpu.memory_space<vmem>>, %arg3: memref<2x32xf32, #tpu.memory_space<vmem>>) attributes {dimension_semantics = [], scalar_prefetch = 0 : i64, scratch_operands = 0 : i64, tpu.core_type = #tpu.core_type<tc>} {
    %c0 = arith.constant 0 : index
    %c0_0 = arith.constant 0 : index
    %0 = vector.load %arg2[%c0, %c0_0] : memref<160x128xf32, #tpu.memory_space<vmem>>, vector<8x32xf32>
    %c8 = arith.constant 8 : index
    %c0_1 = arith.constant 0 : index
    %1 = vector.load %arg2[%c8, %c0_1] : memref<160x128xf32, #tpu.memory_space<vmem>>, vector<16x32xf32>
    %c24 = arith.constant 24 : index
    %c0_2 = arith.constant 0 : index
    %2 = vector.load %arg2[%c24, %c0_2] : memref<160x128xf32, #tpu.memory_space<vmem>>, vector<32x32xf32>
    %c56 = arith.constant 56 : index
    %c0_3 = arith.constant 0 : index
    %3 = vector.load %arg2[%c56, %c0_3] : memref<160x128xf32, #tpu.memory_space<vmem>>, vector<32x64xf32>
    %c88 = arith.constant 88 : index
    %c0_4 = arith.constant 0 : index
    %4 = vector.load %arg2[%c88, %c0_4] : memref<160x128xf32, #tpu.memory_space<vmem>>, vector<64x32xf32>
    %c152 = arith.constant 152 : index
    %c0_5 = arith.constant 0 : index
    %5 = vector.load %arg2[%c152, %c0_5] : memref<160x128xf32, #tpu.memory_space<vmem>>, vector<8x128xf32>
    %6 = vector.extract_strided_slice %5 {offsets = [0, 0], sizes = [1, 32], strides = [1, 1]} : vector<8x128xf32> to vector<1x32xf32>
    %7 = vector.extract_strided_slice %5 {offsets = [1, 0], sizes = [1, 32], strides = [1, 1]} : vector<8x128xf32> to vector<1x32xf32>
    %8 = vector.extract_strided_slice %5 {offsets = [2, 0], sizes = [1, 32], strides = [1, 1]} : vector<8x128xf32> to vector<1x32xf32>
    %9 = vector.extract_strided_slice %5 {offsets = [3, 0], sizes = [1, 64], strides = [1, 1]} : vector<8x128xf32> to vector<1x64xf32>
    %10 = vector.extract_strided_slice %5 {offsets = [4, 0], sizes = [1, 64], strides = [1, 1]} : vector<8x128xf32> to vector<1x64xf32>
    %11 = vector.extract_strided_slice %5 {offsets = [5, 0], sizes = [1, 64], strides = [1, 1]} : vector<8x128xf32> to vector<1x64xf32>
    %12 = vector.extract_strided_slice %5 {offsets = [6, 0], sizes = [1, 32], strides = [1, 1]} : vector<8x128xf32> to vector<1x32xf32>
    %13 = vector.extract_strided_slice %5 {offsets = [7, 0], sizes = [1, 32], strides = [1, 1]} : vector<8x128xf32> to vector<1x32xf32>
    %c0_6 = arith.constant 0 : index
    %c0_7 = arith.constant 0 : index
    %14 = vector.load %arg1[%c0_6, %c0_7] : memref<4x32xf32, #tpu.memory_space<vmem>>, vector<4x32xf32>
    %15 = vector.extract_strided_slice %14 {offsets = [0, 0], sizes = [2, 32], strides = [1, 1]} : vector<4x32xf32> to vector<2x32xf32>
    %cst = arith.constant dense<0.000000e+00> : vector<2x64xf32>
    %16 = tpu.matmul %15, %3, %cst {dimension_numbers = #tpu.dot_dimension_numbers<[1], [0], [0], [1], [0, 0, 1, 1], [], []>} : vector<2x32xf32>, vector<32x64xf32>, vector<2x64xf32> -> vector<2x64xf32>
    %17 = vector.broadcast %9 : vector<1x64xf32> to vector<2x64xf32>
    %18 = arith.addf %16, %17 : vector<2x64xf32>
    %cst_8 = arith.constant dense<0.000000e+00> : vector<64xf32>
    %19 = vector.multi_reduction <add>, %18, %cst_8 [0] : vector<2x64xf32> to vector<64xf32>
    %20 = vector.shape_cast %19 : vector<64xf32> to vector<1x64xf32>
    %cst_9 = arith.constant 2.000000e+00 : f32
    %21 = vector.broadcast %cst_9 : f32 to vector<1x64xf32>
    %22 = arith.divf %20, %21 : vector<1x64xf32>
    %23 = vector.broadcast %22 : vector<1x64xf32> to vector<2x64xf32>
    %24 = arith.subf %18, %23 : vector<2x64xf32>
    %25 = vector.broadcast %22 : vector<1x64xf32> to vector<2x64xf32>
    %26 = arith.subf %18, %25 : vector<2x64xf32>
    %27 = arith.mulf %24, %26 : vector<2x64xf32>
    %cst_10 = arith.constant dense<0.000000e+00> : vector<64xf32>
    %28 = vector.multi_reduction <add>, %27, %cst_10 [0] : vector<2x64xf32> to vector<64xf32>
    %29 = vector.shape_cast %28 : vector<64xf32> to vector<1x64xf32>
    %cst_11 = arith.constant 2.000000e+00 : f32
    %30 = vector.broadcast %cst_11 : f32 to vector<1x64xf32>
    %31 = arith.divf %29, %30 : vector<1x64xf32>
    %32 = vector.broadcast %22 : vector<1x64xf32> to vector<2x64xf32>
    %33 = arith.subf %18, %32 : vector<2x64xf32>
    %cst_12 = arith.constant 9.99999974E-6 : f32
    %34 = vector.broadcast %cst_12 : f32 to vector<1x64xf32>
    %35 = arith.addf %31, %34 : vector<1x64xf32>
    %36 = math.rsqrt %35 : vector<1x64xf32>
    %37 = vector.broadcast %36 : vector<1x64xf32> to vector<2x64xf32>
    %38 = arith.mulf %33, %37 : vector<2x64xf32>
    %39 = vector.broadcast %10 : vector<1x64xf32> to vector<2x64xf32>
    %40 = arith.mulf %38, %39 : vector<2x64xf32>
    %41 = vector.broadcast %11 : vector<1x64xf32> to vector<2x64xf32>
    %42 = arith.addf %40, %41 : vector<2x64xf32>
    %cst_13 = arith.constant 5.000000e-01 : f32
    %43 = vector.broadcast %cst_13 : f32 to vector<2x64xf32>
    %44 = arith.mulf %43, %42 : vector<2x64xf32>
    %45 = arith.mulf %42, %42 : vector<2x64xf32>
    %46 = arith.mulf %45, %42 : vector<2x64xf32>
    %cst_14 = arith.constant 4.471500e-02 : f32
    %47 = vector.broadcast %cst_14 : f32 to vector<2x64xf32>
    %48 = arith.mulf %47, %46 : vector<2x64xf32>
    %49 = arith.addf %42, %48 : vector<2x64xf32>
    %cst_15 = arith.constant 0.797884583 : f32
    %50 = vector.broadcast %cst_15 : f32 to vector<2x64xf32>
    %51 = arith.mulf %50, %49 : vector<2x64xf32>
    %52 = math.tanh %51 : vector<2x64xf32>
    %cst_16 = arith.constant 1.000000e+00 : f32
    %53 = vector.broadcast %cst_16 : f32 to vector<2x64xf32>
    %54 = arith.addf %53, %52 : vector<2x64xf32>
    %55 = arith.mulf %44, %54 : vector<2x64xf32>
    %cst_17 = arith.constant dense<0.000000e+00> : vector<2x32xf32>
    %56 = tpu.matmul %55, %4, %cst_17 {dimension_numbers = #tpu.dot_dimension_numbers<[1], [0], [0], [1], [0, 0, 1, 1], [], []>} : vector<2x64xf32>, vector<64x32xf32>, vector<2x32xf32> -> vector<2x32xf32>
    %57 = vector.broadcast %12 : vector<1x32xf32> to vector<2x32xf32>
    %58 = arith.addf %56, %57 : vector<2x32xf32>
    %c0_18 = arith.constant 0 : index
    %c0_19 = arith.constant 0 : index
    %c0_20 = arith.constant 0 : index
    %59 = vector.load %arg0[%c0_18, %c0_19, %c0_20] : memref<2x16x8xf32, #tpu.memory_space<vmem>>, vector<2x16x8xf32>
    %60 = vector.shape_cast %59 : vector<2x16x8xf32> to vector<32x8xf32>
    %cst_21 = arith.constant dense<0.000000e+00> : vector<32x32xf32>
    %61 = tpu.matmul %60, %0, %cst_21 {dimension_numbers = #tpu.dot_dimension_numbers<[1], [0], [0], [1], [0, 0, 1, 1], [], []>} : vector<32x8xf32>, vector<8x32xf32>, vector<32x32xf32> -> vector<32x32xf32>
    %62 = vector.broadcast %6 : vector<1x32xf32> to vector<32x32xf32>
    %63 = arith.addf %61, %62 : vector<32x32xf32>
    %cst_22 = arith.constant 5.000000e-01 : f32
    %64 = vector.broadcast %cst_22 : f32 to vector<32x32xf32>
    %65 = arith.mulf %64, %63 : vector<32x32xf32>
    %66 = arith.mulf %63, %63 : vector<32x32xf32>
    %67 = arith.mulf %66, %63 : vector<32x32xf32>
    %cst_23 = arith.constant 4.471500e-02 : f32
    %68 = vector.broadcast %cst_23 : f32 to vector<32x32xf32>
    %69 = arith.mulf %68, %67 : vector<32x32xf32>
    %70 = arith.addf %63, %69 : vector<32x32xf32>
    %cst_24 = arith.constant 0.797884583 : f32
    %71 = vector.broadcast %cst_24 : f32 to vector<32x32xf32>
    %72 = arith.mulf %71, %70 : vector<32x32xf32>
    %73 = math.tanh %72 : vector<32x32xf32>
    %cst_25 = arith.constant 1.000000e+00 : f32
    %74 = vector.broadcast %cst_25 : f32 to vector<32x32xf32>
    %75 = arith.addf %74, %73 : vector<32x32xf32>
    %76 = arith.mulf %65, %75 : vector<32x32xf32>
    %77 = vector.extract_strided_slice %76 {offsets = [0, 0], sizes = [16, 32], strides = [1, 1]} : vector<32x32xf32> to vector<16x32xf32>
    %cst_26 = arith.constant dense<0.000000e+00> : vector<32x32xf32>
    %78 = tpu.matmul %77, %1, %cst_26 {dimension_numbers = #tpu.dot_dimension_numbers<[0], [0], [1], [1], [0, 1, 1, 1], [], []>} : vector<16x32xf32>, vector<16x32xf32>, vector<32x32xf32> -> vector<32x32xf32>
    %79 = vector.broadcast %7 : vector<1x32xf32> to vector<32x32xf32>
    %80 = arith.addf %78, %79 : vector<32x32xf32>
    %81 = vector.extract_strided_slice %58 {offsets = [0, 0], sizes = [1, 32], strides = [1, 1]} : vector<2x32xf32> to vector<1x32xf32>
    %82 = vector.broadcast %81 : vector<1x32xf32> to vector<32x32xf32>
    %83 = arith.addf %80, %82 : vector<32x32xf32>
    %cst_27 = arith.constant dense<0.000000e+00> : vector<32x32xf32>
    %84 = tpu.matmul %83, %2, %cst_27 {dimension_numbers = #tpu.dot_dimension_numbers<[0], [0], [1], [1], [0, 1, 1, 1], [], []>} : vector<32x32xf32>, vector<32x32xf32>, vector<32x32xf32> -> vector<32x32xf32>
    %85 = vector.broadcast %8 : vector<1x32xf32> to vector<32x32xf32>
    %86 = arith.addf %84, %85 : vector<32x32xf32>
    %cst_28 = arith.constant 5.000000e-01 : f32
    %87 = vector.broadcast %cst_28 : f32 to vector<32x32xf32>
    %88 = arith.mulf %87, %86 : vector<32x32xf32>
    %89 = arith.mulf %86, %86 : vector<32x32xf32>
    %90 = arith.mulf %89, %86 : vector<32x32xf32>
    %cst_29 = arith.constant 4.471500e-02 : f32
    %91 = vector.broadcast %cst_29 : f32 to vector<32x32xf32>
    %92 = arith.mulf %91, %90 : vector<32x32xf32>
    %93 = arith.addf %86, %92 : vector<32x32xf32>
    %cst_30 = arith.constant 0.797884583 : f32
    %94 = vector.broadcast %cst_30 : f32 to vector<32x32xf32>
    %95 = arith.mulf %94, %93 : vector<32x32xf32>
    %96 = math.tanh %95 : vector<32x32xf32>
    %cst_31 = arith.constant 1.000000e+00 : f32
    %97 = vector.broadcast %cst_31 : f32 to vector<32x32xf32>
    %98 = arith.addf %97, %96 : vector<32x32xf32>
    %99 = arith.mulf %88, %98 : vector<32x32xf32>
    %cst_32 = arith.constant dense<0.000000e+00> : vector<1x32xf32>
    %100 = tpu.matmul %13, %99, %cst_32 {dimension_numbers = #tpu.dot_dimension_numbers<[1], [0], [0], [1], [0, 0, 1, 1], [], []>} : vector<1x32xf32>, vector<32x32xf32>, vector<1x32xf32> -> vector<1x32xf32>
    %101 = vector.extract_strided_slice %14 {offsets = [2, 0], sizes = [1, 32], strides = [1, 1]} : vector<4x32xf32> to vector<1x32xf32>
    %102 = arith.addf %100, %101 : vector<1x32xf32>
    %cst_33 = arith.constant 5.000000e-01 : f32
    %103 = vector.broadcast %cst_33 : f32 to vector<1x32xf32>
    %104 = arith.mulf %103, %102 : vector<1x32xf32>
    %105 = math.tanh %104 : vector<1x32xf32>
    %cst_34 = arith.constant 1.000000e+00 : f32
    %106 = vector.broadcast %cst_34 : f32 to vector<1x32xf32>
    %107 = arith.addf %105, %106 : vector<1x32xf32>
    %cst_35 = arith.constant 5.000000e-01 : f32
    %108 = vector.broadcast %cst_35 : f32 to vector<1x32xf32>
    %109 = arith.mulf %108, %107 : vector<1x32xf32>
    %110 = vector.extract_strided_slice %76 {offsets = [16, 0], sizes = [16, 32], strides = [1, 1]} : vector<32x32xf32> to vector<16x32xf32>
    %cst_36 = arith.constant dense<0.000000e+00> : vector<32x32xf32>
    %111 = tpu.matmul %110, %1, %cst_36 {dimension_numbers = #tpu.dot_dimension_numbers<[0], [0], [1], [1], [0, 1, 1, 1], [], []>} : vector<16x32xf32>, vector<16x32xf32>, vector<32x32xf32> -> vector<32x32xf32>
    %112 = vector.broadcast %7 : vector<1x32xf32> to vector<32x32xf32>
    %113 = arith.addf %111, %112 : vector<32x32xf32>
    %114 = vector.extract_strided_slice %58 {offsets = [1, 0], sizes = [1, 32], strides = [1, 1]} : vector<2x32xf32> to vector<1x32xf32>
    %115 = vector.broadcast %114 : vector<1x32xf32> to vector<32x32xf32>
    %116 = arith.addf %113, %115 : vector<32x32xf32>
    %cst_37 = arith.constant dense<0.000000e+00> : vector<32x32xf32>
    %117 = tpu.matmul %116, %2, %cst_37 {dimension_numbers = #tpu.dot_dimension_numbers<[0], [0], [1], [1], [0, 1, 1, 1], [], []>} : vector<32x32xf32>, vector<32x32xf32>, vector<32x32xf32> -> vector<32x32xf32>
    %118 = vector.broadcast %8 : vector<1x32xf32> to vector<32x32xf32>
    %119 = arith.addf %117, %118 : vector<32x32xf32>
    %cst_38 = arith.constant 5.000000e-01 : f32
    %120 = vector.broadcast %cst_38 : f32 to vector<32x32xf32>
    %121 = arith.mulf %120, %119 : vector<32x32xf32>
    %122 = arith.mulf %119, %119 : vector<32x32xf32>
    %123 = arith.mulf %122, %119 : vector<32x32xf32>
    %cst_39 = arith.constant 4.471500e-02 : f32
    %124 = vector.broadcast %cst_39 : f32 to vector<32x32xf32>
    %125 = arith.mulf %124, %123 : vector<32x32xf32>
    %126 = arith.addf %119, %125 : vector<32x32xf32>
    %cst_40 = arith.constant 0.797884583 : f32
    %127 = vector.broadcast %cst_40 : f32 to vector<32x32xf32>
    %128 = arith.mulf %127, %126 : vector<32x32xf32>
    %129 = math.tanh %128 : vector<32x32xf32>
    %cst_41 = arith.constant 1.000000e+00 : f32
    %130 = vector.broadcast %cst_41 : f32 to vector<32x32xf32>
    %131 = arith.addf %130, %129 : vector<32x32xf32>
    %132 = arith.mulf %121, %131 : vector<32x32xf32>
    %cst_42 = arith.constant dense<0.000000e+00> : vector<1x32xf32>
    %133 = tpu.matmul %13, %132, %cst_42 {dimension_numbers = #tpu.dot_dimension_numbers<[1], [0], [0], [1], [0, 0, 1, 1], [], []>} : vector<1x32xf32>, vector<32x32xf32>, vector<1x32xf32> -> vector<1x32xf32>
    %134 = vector.extract_strided_slice %14 {offsets = [3, 0], sizes = [1, 32], strides = [1, 1]} : vector<4x32xf32> to vector<1x32xf32>
    %135 = arith.addf %133, %134 : vector<1x32xf32>
    %cst_43 = arith.constant 5.000000e-01 : f32
    %136 = vector.broadcast %cst_43 : f32 to vector<1x32xf32>
    %137 = arith.mulf %136, %135 : vector<1x32xf32>
    %138 = math.tanh %137 : vector<1x32xf32>
    %cst_44 = arith.constant 1.000000e+00 : f32
    %139 = vector.broadcast %cst_44 : f32 to vector<1x32xf32>
    %140 = arith.addf %138, %139 : vector<1x32xf32>
    %cst_45 = arith.constant 5.000000e-01 : f32
    %141 = vector.broadcast %cst_45 : f32 to vector<1x32xf32>
    %142 = arith.mulf %141, %140 : vector<1x32xf32>
    %143 = tpu.concatenate %109, %142 in 0 : vector<1x32xf32>, vector<1x32xf32> -> vector<2x32xf32>
    %c0_46 = arith.constant 0 : index
    %c0_47 = arith.constant 0 : index
    %144 = vector.load %arg3[%c0_46, %c0_47] : memref<2x32xf32, #tpu.memory_space<vmem>>, vector<2x32xf32>
    tpu.vector_store %arg3[%c0_46, %c0_47], %143 {strides = array<i32>} : memref<2x32xf32, #tpu.memory_space<vmem>>, vector<2x32xf32>,
    return
  }
}

</mosaic_0001>

<llo_original>
// kernel: channel_transformer_transmitter_forward.1
$region0: #{channel_transformer_transmitter_forward.1}
  #allocation0 [shape = 'u32[]', space=smem, size = 0x4, offset = 0x4, fixed_abs, tag = 'smem constant byte address 0x4 - core index']
  #allocation1 [shape = 'u32[144,128]{1,0:T(1,128)}', space=vmem, size = 0x12000, scoped, tag = 'internal scratch']
  %s0 = inlined_call_operand.vmem [shape: f32[2,16,8], index: 0, kind: input, shape index: {}]
  %s1 = inlined_call_operand.vmem [shape: f32[4,32], index: 1, kind: input, shape index: {}]
  %s2 = inlined_call_operand.hbm [shape: f32[160,128], index: 2, kind: input, shape index: {}]
  %s3 = inlined_call_operand.hbm [shape: f32[2,32], index: 3, kind: output, shape index: {}]
  %s4 = sld [smem:[#allocation0]]
  $region26: #{channel_transformer_transmitter_forward.1} parent=0
    _
  %s6 = ssub.s32 1, %s4
  %s7 = scalar_select 0, %s6, %s4
  $region1: #{channel_transformer_transmitter_forward.1} parent=0
    #allocation2 [shape = 'u8[81920]{0}', space=vmem, size = 0x14000, scoped, tag = 'input window, operand 2, single buffered']
    #allocation3 [shape = 's32[1]{0}', space=sflag, size = 0x4, scoped, tag = 'scoped memory for channel_transformer_transmitter_forward.1']
    #allocation4 [shape = 's32[1]{0}', space=sflag, size = 0x4, scoped, tag = 'scoped memory for channel_transformer_transmitter_forward.1']
    #allocation5 [shape = 'u8[1024]{0}', space=vmem, size = 0x400, scoped, tag = 'output window, operand 0, single buffered']
    %8 = vsyncpa [#allocation3], 0
    %9 = vsyncpa [#allocation4], 0
    // Predicated region
    $region2: #{channel_transformer_transmitter_forward.1} parent=1 // pred_check
      _
    $region3: #{channel_transformer_transmitter_forward.1} parent=1 // pred_check_branch
      %11 = sbr.rel (0) target = $region5
    $region4: #{channel_transformer_transmitter_forward.1} parent=1 // pred_region
      _
    $region5: #{channel_transformer_transmitter_forward.1} parent=1 // pred_fallthru
      _
    // Predicated region
    $region6: #{channel_transformer_transmitter_forward.1} parent=1 // pred_check
      _
    $region7: #{channel_transformer_transmitter_forward.1} parent=1 // pred_check_branch
      %13 = sbr.rel (0) target = $region9
    $region8: #{channel_transformer_transmitter_forward.1} parent=1 // pred_region
      _
    $region9: #{channel_transformer_transmitter_forward.1} parent=1 // pred_fallthru
      _
    // Predicated region
    $region10: #{channel_transformer_transmitter_forward.1} parent=1 // pred_check
      _
    $region11: #{channel_transformer_transmitter_forward.1} parent=1 // pred_check_branch
      %15 = sbr.rel (0) target = $region13
    $region12: #{channel_transformer_transmitter_forward.1} parent=1 // pred_region
      %s17 = ssub.s32 2560, 2560
      %18 = vsyncadd [#allocation3], %s17
      %s19 = sshll.u32 [#allocation2], 4
      %s20 = int_to_ptr.vmem [resolvable:$true] %s19
      %25 = dma.hbm_to_vmem [thread:$0]  %s2, 2560, %s20, [#allocation3], 128, 128, 8
    $region13: #{channel_transformer_transmitter_forward.1} parent=1 // pred_fallthru
      _
    // Predicated region
    $region14: #{channel_transformer_transmitter_forward.1} parent=1 // pred_check
      _
    $region15: #{channel_transformer_transmitter_forward.1} parent=1 // pred_check_branch
      %27 = sbr.rel (0) target = $region17
    $region16: #{channel_transformer_transmitter_forward.1} parent=1 // pred_region
      %28 = dma.done [#allocation3], 2560
    $region17: #{channel_transformer_transmitter_forward.1} parent=1 // pred_fallthru
      _
    %v29 = vld [vmem:[#allocation2] sm:$0xff]
    %v30 = vld [vmem:[#allocation2 + $0x8] sm:$0xff]
    %v31 = vld [vmem:[#allocation2 + $0x10] sm:$0xff]
    %v32 = vld [vmem:[#allocation2 + $0x18] sm:$0xff]
    %v33 = vld [vmem:[#allocation2 + $0x20] sm:$0xff]
    %v34 = vld [vmem:[#allocation2 + $0x28] sm:$0xff]
    %v35 = vld [vmem:[#allocation2 + $0x30] sm:$0xff]
    %v36 = vld [vmem:[#allocation2 + $0x38] sm:$0xff]
    %v37 = vld [vmem:[#allocation2 + $0x40] sm:$0xff]
    %v38 = vld [vmem:[#allocation2 + $0x48] sm:$0xff]
    %v39 = vld [vmem:[#allocation2 + $0x50] sm:$0xff]
    %v40 = vld [vmem:[#allocation2 + $0x58] sm:$0xff]
    %v41 = vld [vmem:[#allocation2 + $0x60] sm:$0xff]
    %v42 = vld [vmem:[#allocation2 + $0x68] sm:$0xff]
    %v43 = vld [vmem:[#allocation2 + $0x70] sm:$0xff]
    %v44 = vld [vmem:[#allocation2 + $0x78] sm:$0xff]
    %v45 = vld [vmem:[#allocation2 + $0x80] sm:$0xff]
    %v46 = vld [vmem:[#allocation2 + $0x88] sm:$0xff]
    %v47 = vld [vmem:[#allocation2 + $0x90] sm:$0xff]
    %v48 = vld [vmem:[#allocation2 + $0x98] sm:$0xff]
    %v49 = vld [vmem:[%s1] sm:$0xf]
    %v50 = vlaneseq
    %v51 = vshrl.u32 %v50, 7
    %v52 = vsub.s32 3, %v51
    %v53 = vrot.slane %v48, %v52
    %vm54 = vcmask 261120
    %v56 = vsel %vm54, %v49, 0
    %58 = vmatprep.subr.mxu0 0.0
    %59 = vmatpush1.msra.mxu0 %v36
    %60 = vmatprep.subr.mxu0 0.0
    %61 = vmatpush1.msra.mxu0 %v37
    %62 = vmatprep.subr.mxu0 0.0
    %63 = vmatpush1.msra.mxu0 %v38
    %64 = vmatprep.subr.mxu0 0.0
    %65 = vmatpush1.msra.mxu0 %v39
    %66 = vmatprep.subr.mxu0 0.0
    %67 = vmatpush1.msra.mxu0 0.0
    %68 = vmatprep.subr.mxu0 0.0
    %69 = vmatpush1.msra.mxu0 0.0
    %70 = vmatprep.subr.mxu0 0.0
    %71 = vmatpush1.msra.mxu0 0.0
    %72 = vmatprep.subr.mxu0 0.0
    %73 = vmatpush1.msra.mxu0 0.0
    %74 = vmatprep.subr.mxu0 0.0
    %75 = vmatpush1.msra.mxu0 0.0
    %76 = vmatprep.subr.mxu0 0.0
    %77 = vmatpush1.msra.mxu0 0.0
    %78 = vmatprep.subr.mxu0 0.0
    %79 = vmatpush1.msra.mxu0 0.0
    %80 = vmatprep.subr.mxu0 0.0
    %81 = vmatpush1.msra.mxu0 0.0
    %82 = vmatprep.subr.mxu0 0.0
    %83 = vmatpush1.msra.mxu0 0.0
    %84 = vmatprep.subr.mxu0 0.0
    %85 = vmatpush1.msra.mxu0 0.0
    %86 = vmatprep.subr.mxu0 0.0
    %87 = vmatpush1.msra.mxu0 0.0
    %88 = vmatprep.subr.mxu0 0.0
    %89 = vmatpush1.msra.mxu0 0.0
    %90 = vmatprep.subr.mxu0 0.0
    %91 = vmatpush1.msra.mxu0 0.0
    %92 = vmatprep.subr.mxu0 0.0
    %93 = vmatpush1.msra.mxu0 0.0
    %94 = vmatprep.subr.mxu0 0.0
    %95 = vmatpush1.msra.mxu0 0.0
    %96 = vmatprep.subr.mxu0 0.0
    %97 = vmatpush1.msra.mxu0 0.0
    %98 = vmatprep.subr.mxu0 0.0
    %99 = vmatpush1.msra.mxu0 0.0
    %100 = vmatprep.subr.mxu0 0.0
    %101 = vmatpush1.msra.mxu0 0.0
    %102 = vmatprep.subr.mxu0 0.0
    %103 = vmatpush1.msra.mxu0 0.0
    %104 = vmatprep.subr.mxu0 0.0
    %105 = vmatpush1.msra.mxu0 0.0
    %106 = vmatprep.subr.mxu0 0.0
    %107 = vmatpush1.msra.mxu0 0.0
    %108 = vmatprep.subr.mxu0 0.0
    %109 = vmatpush1.msra.mxu0 0.0
    %110 = vmatprep.subr.mxu0 0.0
    %111 = vmatpush1.msra.mxu0 0.0
    %112 = vmatprep.subr.mxu0 0.0
    %113 = vmatpush1.msra.mxu0 0.0
    %114 = vmatprep.subr.mxu0 0.0
    %115 = vmatpush1.msra.mxu0 0.0
    %116 = vmatprep.subr.mxu0 0.0
    %117 = vmatpush1.msra.mxu0 0.0
    %118 = vmatprep.subr.mxu0 0.0
    %119 = vmatpush1.msra.mxu0 0.0
    %120 = vmatprep.subr.mxu0 0.0
    %121 = vmatpush1.msra.mxu0 0.0
    %122 = vmatprep.mubr.f32.mxu0 0.0
    %123 = vmatmul.mubr.f32.gmra.mrb[0].mxu0 %v56
    %v124 = vpop.f32.mrb[0].mxu0
    %v125 = vadd.f32 %v53, %v124
    %v126 = vpop.f32.mrb[0].mxu0
    %127 = vdwg.mxu0
    %vm128 = vcmask 517120
    %v129 = vsel %vm128, %v125, 0.0
    %v130 = vrot.slane %v129, 4
    %v131 = vadd.f32 %v129, %v130
    %v132 = vrot.slane %v131, 2
    %v133 = vadd.f32 %v131, %v132
    %v134 = vrot.slane %v133, 1
    %v135 = vadd.f32 %v133, %v134
    %v136 = vrcp.pop 2.0
    %v137 = vmul.f32 %v135, %v136
    %v138 = vsub.f32 %v125, %v137
    %v139 = vmul.f32 %v138, %v138
    %v140 = vsel %vm128, %v139, 0.0
    %v141 = vrot.slane %v140, 4
    %v142 = vadd.f32 %v140, %v141
    %v143 = vrot.slane %v142, 2
    %v144 = vadd.f32 %v142, %v143
    %v145 = vrot.slane %v144, 1
    %v146 = vadd.f32 %v144, %v145
    %v147 = vmul.f32 %v146, %v136
    %v148 = vadd.f32 %v147, 1e-05
    %v149 = vrsqrt.pop %v148
    %v150 = vmul.f32 %v138, %v149
    %v151 = vlaneseq
    %v152 = vshrl.u32 %v151, 7
    %v153 = vsub.s32 4, %v152
    %v154 = vrot.slane %v48, %v153
    %v155 = vmul.f32 %v150, %v154
    %v156 = vlaneseq
    %v157 = vshrl.u32 %v156, 7
    %v158 = vsub.s32 5, %v157
    %v159 = vrot.slane %v48, %v158
    %v160 = vadd.f32 %v155, %v159
    %v161 = vmul.f32 %v160, 0.5
    %v162 = vmul.f32 %v160, %v160
    %v163 = vmul.f32 %v162, %v160
    %v164 = vmul.f32 %v163, 0.044715
    %v165 = vadd.f32 %v160, %v164
    %v166 = vmul.f32 %v165, 0.7978846
    %v167 = vtanh.pop %v166
    %v168 = vadd.f32 %v167, 1.0
    %v169 = vmul.f32 %v161, %v168
    %v170 = vlaneseq
    %v171 = vshrl.u32 %v170, 7
    %v172 = vsub.s32 6, %v171
    %v173 = vrot.slane %v48, %v172
    %vm174 = vcmask 523264
    %v176 = vsel %vm174, %v169, 0
    %178 = vmatprep.subr.mxu0 0.0
    %179 = vmatpush1.msra.mxu0 %v40
    %180 = vmatprep.subr.mxu0 0.0
    %181 = vmatpush1.msra.mxu0 %v41
    %182 = vmatprep.subr.mxu0 0.0
    %183 = vmatpush1.msra.mxu0 %v42
    %184 = vmatprep.subr.mxu0 0.0
    %185 = vmatpush1.msra.mxu0 %v43
    %186 = vmatprep.subr.mxu0 0.0
    %187 = vmatpush1.msra.mxu0 %v44
    %188 = vmatprep.subr.mxu0 0.0
    %189 = vmatpush1.msra.mxu0 %v45
    %190 = vmatprep.subr.mxu0 0.0
    %191 = vmatpush1.msra.mxu0 %v46
    %192 = vmatprep.subr.mxu0 0.0
    %193 = vmatpush1.msra.mxu0 %v47
    %194 = vmatprep.subr.mxu0 0.0
    %195 = vmatpush1.msra.mxu0 0.0
    %196 = vmatprep.subr.mxu0 0.0
    %197 = vmatpush1.msra.mxu0 0.0
    %198 = vmatprep.subr.mxu0 0.0
    %199 = vmatpush1.msra.mxu0 0.0
    %200 = vmatprep.subr.mxu0 0.0
    %201 = vmatpush1.msra.mxu0 0.0
    %202 = vmatprep.subr.mxu0 0.0
    %203 = vmatpush1.msra.mxu0 0.0
    %204 = vmatprep.subr.mxu0 0.0
    %205 = vmatpush1.msra.mxu0 0.0
    %206 = vmatprep.subr.mxu0 0.0
    %207 = vmatpush1.msra.mxu0 0.0
    %208 = vmatprep.subr.mxu0 0.0
    %209 = vmatpush1.msra.mxu0 0.0
    %210 = vmatprep.subr.mxu0 0.0
    %211 = vmatpush1.msra.mxu0 0.0
    %212 = vmatprep.subr.mxu0 0.0
    %213 = vmatpush1.msra.mxu0 0.0
    %214 = vmatprep.subr.mxu0 0.0
    %215 = vmatpush1.msra.mxu0 0.0
    %216 = vmatprep.subr.mxu0 0.0
    %217 = vmatpush1.msra.mxu0 0.0
    %218 = vmatprep.subr.mxu0 0.0
    %219 = vmatpush1.msra.mxu0 0.0
    %220 = vmatprep.subr.mxu0 0.0
    %221 = vmatpush1.msra.mxu0 0.0
    %222 = vmatprep.subr.mxu0 0.0
    %223 = vmatpush1.msra.mxu0 0.0
    %224 = vmatprep.subr.mxu0 0.0
    %225 = vmatpush1.msra.mxu0 0.0
    %226 = vmatprep.subr.mxu0 0.0
    %227 = vmatpush1.msra.mxu0 0.0
    %228 = vmatprep.subr.mxu0 0.0
    %229 = vmatpush1.msra.mxu0 0.0
    %230 = vmatprep.subr.mxu0 0.0
    %231 = vmatpush1.msra.mxu0 0.0
    %232 = vmatprep.subr.mxu0 0.0
    %233 = vmatpush1.msra.mxu0 0.0
    %234 = vmatprep.subr.mxu0 0.0
    %235 = vmatpush1.msra.mxu0 0.0
    %236 = vmatprep.subr.mxu0 0.0
    %237 = vmatpush1.msra.mxu0 0.0
    %238 = vmatprep.subr.mxu0 0.0
    %239 = vmatpush1.msra.mxu0 0.0
    %240 = vmatprep.subr.mxu0 0.0
    %241 = vmatpush1.msra.mxu0 0.0
    %242 = vmatprep.mubr.f32.mxu0 0.0
    %243 = vmatmul.mubr.f32.gmra.mrb[0].mxu0 %v176
    %v244 = vpop.f32.mrb[0].mxu0
    %v245 = vadd.f32 %v173, %v244
    %v246 = vpop.f32.mrb[0].mxu0
    %247 = vdwg.mxu0
    %v248 = vld [vmem:[%s0] sm:$0xff]
    %v249 = vld [vmem:[%s0 + $0x8] sm:$0xff]
    %v250 = vld [vmem:[%s0 + $0x10] sm:$0xff]
    %v251 = vld [vmem:[%s0 + $0x18] sm:$0xff]
    %v252 = vlaneseq
    %v253 = vshrl.u32 %v252, 7
    %v254 = vsub.s32 0, %v253
    %v255 = vrot.slane %v48, %v254
    %vm256 = vcmask 64512
    %v258 = vsel %vm256, %v248, 0
    %v261 = vsel %vm256, %v249, 0
    %v264 = vsel %vm256, %v250, 0
    %v267 = vsel %vm256, %v251, 0
    %269 = vmatprep.subr.mxu0 0.0
    %270 = vmatpush1.msra.mxu0 %v29
    %271 = vmatprep.subr.mxu0 0.0
    %272 = vmatpush1.msra.mxu0 0.0
    %273 = vmatprep.subr.mxu0 0.0
    %274 = vmatpush1.msra.mxu0 0.0
    %275 = vmatprep.subr.mxu0 0.0
    %276 = vmatpush1.msra.mxu0 0.0
    %277 = vmatprep.subr.mxu0 0.0
    %278 = vmatpush1.msra.mxu0 0.0
    %279 = vmatprep.subr.mxu0 0.0
    %280 = vmatpush1.msra.mxu0 0.0
    %281 = vmatprep.subr.mxu0 0.0
    %282 = vmatpush1.msra.mxu0 0.0
    %283 = vmatprep.subr.mxu0 0.0
    %284 = vmatpush1.msra.mxu0 0.0
    %285 = vmatprep.subr.mxu0 0.0
    %286 = vmatpush1.msra.mxu0 0.0
    %287 = vmatprep.subr.mxu0 0.0
    %288 = vmatpush1.msra.mxu0 0.0
    %289 = vmatprep.subr.mxu0 0.0
    %290 = vmatpush1.msra.mxu0 0.0
    %291 = vmatprep.subr.mxu0 0.0
    %292 = vmatpush1.msra.mxu0 0.0
    %293 = vmatprep.subr.mxu0 0.0
    %294 = vmatpush1.msra.mxu0 0.0
    %295 = vmatprep.subr.mxu0 0.0
    %296 = vmatpush1.msra.mxu0 0.0
    %297 = vmatprep.subr.mxu0 0.0
    %298 = vmatpush1.msra.mxu0 0.0
    %299 = vmatprep.subr.mxu0 0.0
    %300 = vmatpush1.msra.mxu0 0.0
    %301 = vmatprep.subr.mxu0 0.0
    %302 = vmatpush1.msra.mxu0 0.0
    %303 = vmatprep.subr.mxu0 0.0
    %304 = vmatpush1.msra.mxu0 0.0
    %305 = vmatprep.subr.mxu0 0.0
    %306 = vmatpush1.msra.mxu0 0.0
    %307 = vmatprep.subr.mxu0 0.0
    %308 = vmatpush1.msra.mxu0 0.0
    %309 = vmatprep.subr.mxu0 0.0
    %310 = vmatpush1.msra.mxu0 0.0
    %311 = vmatprep.subr.mxu0 0.0
    %312 = vmatpush1.msra.mxu0 0.0
    %313 = vmatprep.subr.mxu0 0.0
    %314 = vmatpush1.msra.mxu0 0.0
    %315 = vmatprep.subr.mxu0 0.0
    %316 = vmatpush1.msra.mxu0 0.0
    %317 = vmatprep.subr.mxu0 0.0
    %318 = vmatpush1.msra.mxu0 0.0
    %319 = vmatprep.subr.mxu0 0.0
    %320 = vmatpush1.msra.mxu0 0.0
    %321 = vmatprep.subr.mxu0 0.0
    %322 = vmatpush1.msra.mxu0 0.0
    %323 = vmatprep.subr.mxu0 0.0
    %324 = vmatpush1.msra.mxu0 0.0
    %325 = vmatprep.subr.mxu0 0.0
    %326 = vmatpush1.msra.mxu0 0.0
    %327 = vmatprep.subr.mxu0 0.0
    %328 = vmatpush1.msra.mxu0 0.0
    %329 = vmatprep.subr.mxu0 0.0
    %330 = vmatpush1.msra.mxu0 0.0
    %331 = vmatprep.subr.mxu0 0.0
    %332 = vmatpush1.msra.mxu0 0.0
    %333 = vmatprep.mubr.f32.mxu0 0.0
    %334 = vmatmul.mubr.f32.gmra.mrb[0].mxu0 %v258
    %v335 = vpop.f32.mrb[0].mxu0
    %v336 = vadd.f32 %v255, %v335
    %v337 = vpop.f32.mrb[0].mxu0
    %338 = vmatprep.mubr.f32.mxu0 0.0
    %339 = vmatmul.mubr.f32.gmra.mrb[0].mxu0 %v261
    %v340 = vpop.f32.mrb[0].mxu0
    %v341 = vadd.f32 %v255, %v340
    %v342 = vpop.f32.mrb[0].mxu0
    %343 = vmatprep.mubr.f32.mxu0 0.0
    %344 = vmatmul.mubr.f32.gmra.mrb[0].mxu0 %v264
    %v345 = vpop.f32.mrb[0].mxu0
    %v346 = vadd.f32 %v255, %v345
    %v347 = vpop.f32.mrb[0].mxu0
    %348 = vmatprep.mubr.f32.mxu0 0.0
    %349 = vmatmul.mubr.f32.gmra.mrb[0].mxu0 %v267
    %v350 = vpop.f32.mrb[0].mxu0
    %v351 = vadd.f32 %v255, %v350
    %v352 = vpop.f32.mrb[0].mxu0
    %353 = vdwg.mxu0
    %v354 = vmul.f32 %v336, 0.5
    %v355 = vmul.f32 %v341, 0.5
    %v356 = vmul.f32 %v346, 0.5
    %v357 = vmul.f32 %v351, 0.5
    %v358 = vmul.f32 %v336, %v336
    %v359 = vmul.f32 %v341, %v341
    %v360 = vmul.f32 %v346, %v346
    %v361 = vmul.f32 %v351, %v351
    %v362 = vmul.f32 %v358, %v336
    %v363 = vmul.f32 %v359, %v341
    %v364 = vmul.f32 %v360, %v346
    %v365 = vmul.f32 %v361, %v351
    %v366 = vmul.f32 %v362, 0.044715
    %v367 = vmul.f32 %v363, 0.044715
    %v368 = vmul.f32 %v364, 0.044715
    %v369 = vmul.f32 %v365, 0.044715
    %v370 = vadd.f32 %v336, %v366
    %v371 = vadd.f32 %v341, %v367
    %v372 = vadd.f32 %v346, %v368
    %v373 = vadd.f32 %v351, %v369
    %v374 = vmul.f32 %v370, 0.7978846
    %v375 = vmul.f32 %v371, 0.7978846
    %v376 = vmul.f32 %v372, 0.7978846
    %v377 = vmul.f32 %v373, 0.7978846
    %v378 = vtanh.pop %v374
    %v379 = vtanh.pop %v375
    %v380 = vtanh.pop %v376
    %v381 = vtanh.pop %v377
    %v382 = vadd.f32 %v378, 1.0
    %v383 = vadd.f32 %v379, 1.0
    %v384 = vadd.f32 %v380, 1.0
    %v385 = vadd.f32 %v381, 1.0
    %v386 = vmul.f32 %v354, %v382
    %v387 = vmul.f32 %v355, %v383
    %v388 = vmul.f32 %v356, %v384
    %v389 = vmul.f32 %v357, %v385
    %v390 = vlaneseq
    %v391 = vshrl.u32 %v390, 7
    %v392 = vsub.s32 1, %v391
    %v393 = vrot.slane %v48, %v392
    %394 = vxpose.xlu0.b32.start [1/16] %v386, 128
    %395 = vxpose.xlu0.b32.cont [2/16] %v387, 128
    %396 = vxpose.xlu0.b32.cont [3/16] 0.0, 128
    %397 = vxpose.xlu0.b32.cont [4/16] 0.0, 128
    %398 = vxpose.xlu0.b32.cont [5/16] 0.0, 128
    %399 = vxpose.xlu0.b32.cont [6/16] 0.0, 128
    %400 = vxpose.xlu0.b32.cont [7/16] 0.0, 128
    %401 = vxpose.xlu0.b32.cont [8/16] 0.0, 128
    %402 = vxpose.xlu0.b32.cont [9/16] 0.0, 128
    %403 = vxpose.xlu0.b32.cont [10/16] 0.0, 128
    %404 = vxpose.xlu0.b32.cont [11/16] 0.0, 128
    %405 = vxpose.xlu0.b32.cont [12/16] 0.0, 128
    %406 = vxpose.xlu0.b32.cont [13/16] 0.0, 128
    %407 = vxpose.xlu0.b32.cont [14/16] 0.0, 128
    %408 = vxpose.xlu0.b32.cont [15/16] 0.0, 128
    %409 = vxpose.xlu0.b32.end [16/16] 0.0, 128
    %v410 = vpop.trf.xlu0
    %v411 = vpop.trf.xlu0
    %v412 = vpop.trf.xlu0
    %v413 = vpop.trf.xlu0
    %v414 = vpop.trf.xlu0
    %v415 = vpop.trf.xlu0
    %v416 = vpop.trf.xlu0
    %v417 = vpop.trf.xlu0
    %v418 = vpop.trf.xlu0
    %v419 = vpop.trf.xlu0
    %v420 = vpop.trf.xlu0
    %v421 = vpop.trf.xlu0
    %v422 = vpop.trf.xlu0
    %v423 = vpop.trf.xlu0
    %v424 = vpop.trf.xlu0
    %v425 = vpop.trf.xlu0
    %vm426 = vcmask 130048
    %v428 = vsel %vm426, %v410, 0
    %v431 = vsel %vm426, %v411, 0
    %v434 = vsel %vm426, %v412, 0
    %v437 = vsel %vm426, %v413, 0
    %439 = vmatprep.subr.mxu0 0.0
    %440 = vmatpush1.msra.mxu0 %v30
    %441 = vmatprep.subr.mxu0 0.0
    %442 = vmatpush1.msra.mxu0 %v31
    %443 = vmatprep.subr.mxu0 0.0
    %444 = vmatpush1.msra.mxu0 0.0
    %445 = vmatprep.subr.mxu0 0.0
    %446 = vmatpush1.msra.mxu0 0.0
    %447 = vmatprep.subr.mxu0 0.0
    %448 = vmatpush1.msra.mxu0 0.0
    %449 = vmatprep.subr.mxu0 0.0
    %450 = vmatpush1.msra.mxu0 0.0
    %451 = vmatprep.subr.mxu0 0.0
    %452 = vmatpush1.msra.mxu0 0.0
    %453 = vmatprep.subr.mxu0 0.0
    %454 = vmatpush1.msra.mxu0 0.0
    %455 = vmatprep.subr.mxu0 0.0
    %456 = vmatpush1.msra.mxu0 0.0
    %457 = vmatprep.subr.mxu0 0.0
    %458 = vmatpush1.msra.mxu0 0.0
    %459 = vmatprep.subr.mxu0 0.0
    %460 = vmatpush1.msra.mxu0 0.0
    %461 = vmatprep.subr.mxu0 0.0
    %462 = vmatpush1.msra.mxu0 0.0
    %463 = vmatprep.subr.mxu0 0.0
    %464 = vmatpush1.msra.mxu0 0.0
    %465 = vmatprep.subr.mxu0 0.0
    %466 = vmatpush1.msra.mxu0 0.0
    %467 = vmatprep.subr.mxu0 0.0
    %468 = vmatpush1.msra.mxu0 0.0
    %469 = vmatprep.subr.mxu0 0.0
    %470 = vmatpush1.msra.mxu0 0.0
    %471 = vmatprep.subr.mxu0 0.0
    %472 = vmatpush1.msra.mxu0 0.0
    %473 = vmatprep.subr.mxu0 0.0
    %474 = vmatpush1.msra.mxu0 0.0
    %475 = vmatprep.subr.mxu0 0.0
    %476 = vmatpush1.msra.mxu0 0.0
    %477 = vmatprep.subr.mxu0 0.0
    %478 = vmatpush1.msra.mxu0 0.0
    %479 = vmatprep.subr.mxu0 0.0
    %480 = vmatpush1.msra.mxu0 0.0
    %481 = vmatprep.subr.mxu0 0.0
    %482 = vmatpush1.msra.mxu0 0.0
    %483 = vmatprep.subr.mxu0 0.0
    %484 = vmatpush1.msra.mxu0 0.0
    %485 = vmatprep.subr.mxu0 0.0
    %486 = vmatpush1.msra.mxu0 0.0
    %487 = vmatprep.subr.mxu0 0.0
    %488 = vmatpush1.msra.mxu0 0.0
    %489 = vmatprep.subr.mxu0 0.0
    %490 = vmatpush1.msra.mxu0 0.0
    %491 = vmatprep.subr.mxu0 0.0
    %492 = vmatpush1.msra.mxu0 0.0
    %493 = vmatprep.subr.mxu0 0.0
    %494 = vmatpush1.msra.mxu0 0.0
    %495 = vmatprep.subr.mxu0 0.0
    %496 = vmatpush1.msra.mxu0 0.0
    %497 = vmatprep.subr.mxu0 0.0
    %498 = vmatpush1.msra.mxu0 0.0
    %499 = vmatprep.subr.mxu0 0.0
    %500 = vmatpush1.msra.mxu0 0.0
    %501 = vmatprep.subr.mxu0 0.0
    %502 = vmatpush1.msra.mxu0 0.0
    %503 = vmatprep.mubr.f32.mxu0 0.0
    %504 = vmatmul.mubr.f32.gmra.mrb[0].mxu0 %v428
    %v505 = vpop.f32.mrb[0].mxu0
    %v506 = vadd.f32 %v393, %v505
    %v507 = vpop.f32.mrb[0].mxu0
    %508 = vmatprep.mubr.f32.mxu0 0.0
    %509 = vmatmul.mubr.f32.gmra.mrb[0].mxu0 %v431
    %v510 = vpop.f32.mrb[0].mxu0
    %v511 = vadd.f32 %v393, %v510
    %v512 = vpop.f32.mrb[0].mxu0
    %513 = vmatprep.mubr.f32.mxu0 0.0
    %514 = vmatmul.mubr.f32.gmra.mrb[0].mxu0 %v434
    %v515 = vpop.f32.mrb[0].mxu0
    %v516 = vadd.f32 %v393, %v515
    %v517 = vpop.f32.mrb[0].mxu0
    %518 = vmatprep.mubr.f32.mxu0 0.0
    %519 = vmatmul.mubr.f32.gmra.mrb[0].mxu0 %v437
    %v520 = vpop.f32.mrb[0].mxu0
    %v521 = vadd.f32 %v393, %v520
    %v522 = vpop.f32.mrb[0].mxu0
    %523 = vdwg.mxu0
    %v524 = vlaneseq
    %v525 = vshrl.u32 %v524, 7
    %v526 = vsub.s32 0, %v525
    %v527 = vrot.slane %v245, %v526
    %v528 = vadd.f32 %v506, %v527
    %v529 = vadd.f32 %v511, %v527
    %v530 = vadd.f32 %v516, %v527
    %v531 = vadd.f32 %v521, %v527
    %v532 = vlaneseq
    %v533 = vshrl.u32 %v532, 7
    %v534 = vsub.s32 2, %v533
    %v535 = vrot.slane %v48, %v534
    %536 = vxpose.xlu0.b32.start [1/16] %v528, 128
    %537 = vxpose.xlu0.b32.cont [2/16] %v529, 128
    %538 = vxpose.xlu0.b32.cont [3/16] %v530, 128
    %539 = vxpose.xlu0.b32.cont [4/16] %v531, 128
    %540 = vxpose.xlu0.b32.cont [5/16] 0.0, 128
    %541 = vxpose.xlu0.b32.cont [6/16] 0.0, 128
    %542 = vxpose.xlu0.b32.cont [7/16] 0.0, 128
    %543 = vxpose.xlu0.b32.cont [8/16] 0.0, 128
    %544 = vxpose.xlu0.b32.cont [9/16] 0.0, 128
    %545 = vxpose.xlu0.b32.cont [10/16] 0.0, 128
    %546 = vxpose.xlu0.b32.cont [11/16] 0.0, 128
    %547 = vxpose.xlu0.b32.cont [12/16] 0.0, 128
    %548 = vxpose.xlu0.b32.cont [13/16] 0.0, 128
    %549 = vxpose.xlu0.b32.cont [14/16] 0.0, 128
    %550 = vxpose.xlu0.b32.cont [15/16] 0.0, 128
    %551 = vxpose.xlu0.b32.end [16/16] 0.0, 128
    %v552 = vpop.trf.xlu0
    %v553 = vpop.trf.xlu0
    %v554 = vpop.trf.xlu0
    %v555 = vpop.trf.xlu0
    %v556 = vpop.trf.xlu0
    %v557 = vpop.trf.xlu0
    %v558 = vpop.trf.xlu0
    %v559 = vpop.trf.xlu0
    %v560 = vpop.trf.xlu0
    %v561 = vpop.trf.xlu0
    %v562 = vpop.trf.xlu0
    %v563 = vpop.trf.xlu0
    %v564 = vpop.trf.xlu0
    %v565 = vpop.trf.xlu0
    %v566 = vpop.trf.xlu0
    %v567 = vpop.trf.xlu0
    %v569 = vsel %vm54, %v552, 0
    %v572 = vsel %vm54, %v553, 0
    %v575 = vsel %vm54, %v554, 0
    %v578 = vsel %vm54, %v555, 0
    %580 = vmatprep.subr.mxu0 0.0
    %581 = vmatpush1.msra.mxu0 %v32
    %582 = vmatprep.subr.mxu0 0.0
    %583 = vmatpush1.msra.mxu0 %v33
    %584 = vmatprep.subr.mxu0 0.0
    %585 = vmatpush1.msra.mxu0 %v34
    %586 = vmatprep.subr.mxu0 0.0
    %587 = vmatpush1.msra.mxu0 %v35
    %588 = vmatprep.subr.mxu0 0.0
    %589 = vmatpush1.msra.mxu0 0.0
    %590 = vmatprep.subr.mxu0 0.0
    %591 = vmatpush1.msra.mxu0 0.0
    %592 = vmatprep.subr.mxu0 0.0
    %593 = vmatpush1.msra.mxu0 0.0
    %594 = vmatprep.subr.mxu0 0.0
    %595 = vmatpush1.msra.mxu0 0.0
    %596 = vmatprep.subr.mxu0 0.0
    %597 = vmatpush1.msra.mxu0 0.0
    %598 = vmatprep.subr.mxu0 0.0
    %599 = vmatpush1.msra.mxu0 0.0
    %600 = vmatprep.subr.mxu0 0.0
    %601 = vmatpush1.msra.mxu0 0.0
    %602 = vmatprep.subr.mxu0 0.0
    %603 = vmatpush1.msra.mxu0 0.0
    %604 = vmatprep.subr.mxu0 0.0
    %605 = vmatpush1.msra.mxu0 0.0
    %606 = vmatprep.subr.mxu0 0.0
    %607 = vmatpush1.msra.mxu0 0.0
    %608 = vmatprep.subr.mxu0 0.0
    %609 = vmatpush1.msra.mxu0 0.0
    %610 = vmatprep.subr.mxu0 0.0
    %611 = vmatpush1.msra.mxu0 0.0
    %612 = vmatprep.subr.mxu0 0.0
    %613 = vmatpush1.msra.mxu0 0.0
    %614 = vmatprep.subr.mxu0 0.0
    %615 = vmatpush1.msra.mxu0 0.0
    %616 = vmatprep.subr.mxu0 0.0
    %617 = vmatpush1.msra.mxu0 0.0
    %618 = vmatprep.subr.mxu0 0.0
    %619 = vmatpush1.msra.mxu0 0.0
    %620 = vmatprep.subr.mxu0 0.0
    %621 = vmatpush1.msra.mxu0 0.0
    %622 = vmatprep.subr.mxu0 0.0
    %623 = vmatpush1.msra.mxu0 0.0
    %624 = vmatprep.subr.mxu0 0.0
    %625 = vmatpush1.msra.mxu0 0.0
    %626 = vmatprep.subr.mxu0 0.0
    %627 = vmatpush1.msra.mxu0 0.0
    %628 = vmatprep.subr.mxu0 0.0
    %629 = vmatpush1.msra.mxu0 0.0
    %630 = vmatprep.subr.mxu0 0.0
    %631 = vmatpush1.msra.mxu0 0.0
    %632 = vmatprep.subr.mxu0 0.0
    %633 = vmatpush1.msra.mxu0 0.0
    %634 = vmatprep.subr.mxu0 0.0
    %635 = vmatpush1.msra.mxu0 0.0
    %636 = vmatprep.subr.mxu0 0.0
    %637 = vmatpush1.msra.mxu0 0.0
    %638 = vmatprep.subr.mxu0 0.0
    %639 = vmatpush1.msra.mxu0 0.0
    %640 = vmatprep.subr.mxu0 0.0
    %641 = vmatpush1.msra.mxu0 0.0
    %642 = vmatprep.subr.mxu0 0.0
    %643 = vmatpush1.msra.mxu0 0.0
    %644 = vmatprep.mubr.f32.mxu0 0.0
    %645 = vmatmul.mubr.f32.gmra.mrb[0].mxu0 %v569
    %v646 = vpop.f32.mrb[0].mxu0
    %v647 = vadd.f32 %v535, %v646
    %v648 = vpop.f32.mrb[0].mxu0
    %649 = vmatprep.mubr.f32.mxu0 0.0
    %650 = vmatmul.mubr.f32.gmra.mrb[0].mxu0 %v572
    %v651 = vpop.f32.mrb[0].mxu0
    %v652 = vadd.f32 %v535, %v651
    %v653 = vpop.f32.mrb[0].mxu0
    %654 = vmatprep.mubr.f32.mxu0 0.0
    %655 = vmatmul.mubr.f32.gmra.mrb[0].mxu0 %v575
    %v656 = vpop.f32.mrb[0].mxu0
    %v657 = vadd.f32 %v535, %v656
    %v658 = vpop.f32.mrb[0].mxu0
    %659 = vmatprep.mubr.f32.mxu0 0.0
    %660 = vmatmul.mubr.f32.gmra.mrb[0].mxu0 %v578
    %v661 = vpop.f32.mrb[0].mxu0
    %v662 = vadd.f32 %v535, %v661
    %v663 = vpop.f32.mrb[0].mxu0
    %664 = vdwg.mxu0
    %v665 = vmul.f32 %v647, 0.5
    %v666 = vmul.f32 %v652, 0.5
    %v667 = vmul.f32 %v657, 0.5
    %v668 = vmul.f32 %v662, 0.5
    %v669 = vmul.f32 %v647, %v647
    %v670 = vmul.f32 %v652, %v652
    %v671 = vmul.f32 %v657, %v657
    %v672 = vmul.f32 %v662, %v662
    %v673 = vmul.f32 %v669, %v647
    %v674 = vmul.f32 %v670, %v652
    %v675 = vmul.f32 %v671, %v657
    %v676 = vmul.f32 %v672, %v662
    %v677 = vmul.f32 %v673, 0.044715
    %v678 = vmul.f32 %v674, 0.044715
    %v679 = vmul.f32 %v675, 0.044715
    %v680 = vmul.f32 %v676, 0.044715
    %v681 = vadd.f32 %v647, %v677
    %v682 = vadd.f32 %v652, %v678
    %v683 = vadd.f32 %v657, %v679
    %v684 = vadd.f32 %v662, %v680
    %v685 = vmul.f32 %v681, 0.7978846
    %v686 = vmul.f32 %v682, 0.7978846
    %v687 = vmul.f32 %v683, 0.7978846
    %v688 = vmul.f32 %v684, 0.7978846
    %v689 = vtanh.pop %v685
    %v690 = vtanh.pop %v686
    %v691 = vtanh.pop %v687
    %v692 = vtanh.pop %v688
    %v693 = vadd.f32 %v689, 1.0
    %v694 = vadd.f32 %v690, 1.0
    %v695 = vadd.f32 %v691, 1.0
    %v696 = vadd.f32 %v692, 1.0
    %v697 = vmul.f32 %v665, %v693
    %v698 = vmul.f32 %v666, %v694
    %v699 = vmul.f32 %v667, %v695
    %v700 = vmul.f32 %v668, %v696
    %v702 = vrot.slane %v48, 7
    %v703 = vrot.slane %v49, 2
    %v705 = vsel %vm54, %v702, 0
    %707 = vmatprep.subr.mxu0 0.0
    %708 = vmatpush1.msra.mxu0 %v697
    %709 = vmatprep.subr.mxu0 0.0
    %710 = vmatpush1.msra.mxu0 %v698
    %711 = vmatprep.subr.mxu0 0.0
    %712 = vmatpush1.msra.mxu0 %v699
    %713 = vmatprep.subr.mxu0 0.0
    %714 = vmatpush1.msra.mxu0 %v700
    %715 = vmatprep.subr.mxu0 0.0
    %716 = vmatpush1.msra.mxu0 0.0
    %717 = vmatprep.subr.mxu0 0.0
    %718 = vmatpush1.msra.mxu0 0.0
    %719 = vmatprep.subr.mxu0 0.0
    %720 = vmatpush1.msra.mxu0 0.0
    %721 = vmatprep.subr.mxu0 0.0
    %722 = vmatpush1.msra.mxu0 0.0
    %723 = vmatprep.subr.mxu0 0.0
    %724 = vmatpush1.msra.mxu0 0.0
    %725 = vmatprep.subr.mxu0 0.0
    %726 = vmatpush1.msra.mxu0 0.0
    %727 = vmatprep.subr.mxu0 0.0
    %728 = vmatpush1.msra.mxu0 0.0
    %729 = vmatprep.subr.mxu0 0.0
    %730 = vmatpush1.msra.mxu0 0.0
    %731 = vmatprep.subr.mxu0 0.0
    %732 = vmatpush1.msra.mxu0 0.0
    %733 = vmatprep.subr.mxu0 0.0
    %734 = vmatpush1.msra.mxu0 0.0
    %735 = vmatprep.subr.mxu0 0.0
    %736 = vmatpush1.msra.mxu0 0.0
    %737 = vmatprep.subr.mxu0 0.0
    %738 = vmatpush1.msra.mxu0 0.0
    %739 = vmatprep.subr.mxu0 0.0
    %740 = vmatpush1.msra.mxu0 0.0
    %741 = vmatprep.subr.mxu0 0.0
    %742 = vmatpush1.msra.mxu0 0.0
    %743 = vmatprep.subr.mxu0 0.0
    %744 = vmatpush1.msra.mxu0 0.0
    %745 = vmatprep.subr.mxu0 0.0
    %746 = vmatpush1.msra.mxu0 0.0
    %747 = vmatprep.subr.mxu0 0.0
    %748 = vmatpush1.msra.mxu0 0.0
    %749 = vmatprep.subr.mxu0 0.0
    %750 = vmatpush1.msra.mxu0 0.0
    %751 = vmatprep.subr.mxu0 0.0
    %752 = vmatpush1.msra.mxu0 0.0
    %753 = vmatprep.subr.mxu0 0.0
    %754 = vmatpush1.msra.mxu0 0.0
    %755 = vmatprep.subr.mxu0 0.0
    %756 = vmatpush1.msra.mxu0 0.0
    %757 = vmatprep.subr.mxu0 0.0
    %758 = vmatpush1.msra.mxu0 0.0
    %759 = vmatprep.subr.mxu0 0.0
    %760 = vmatpush1.msra.mxu0 0.0
    %761 = vmatprep.subr.mxu0 0.0
    %762 = vmatpush1.msra.mxu0 0.0
    %763 = vmatprep.subr.mxu0 0.0
    %764 = vmatpush1.msra.mxu0 0.0
    %765 = vmatprep.subr.mxu0 0.0
    %766 = vmatpush1.msra.mxu0 0.0
    %767 = vmatprep.subr.mxu0 0.0
    %768 = vmatpush1.msra.mxu0 0.0
    %769 = vmatprep.subr.mxu0 0.0
    %770 = vmatpush1.msra.mxu0 0.0
    %771 = vmatprep.mubr.f32.mxu0 0.0
    %772 = vmatmul.mubr.f32.gmra.mrb[0].mxu0 %v705
    %v773 = vpop.f32.mrb[0].mxu0
    %v774 = vadd.f32 %v703, %v773
    %v775 = vpop.f32.mrb[0].mxu0
    %776 = vdwg.mxu0
    %v777 = vmul.f32 %v774, 0.5
    %v778 = vtanh.pop %v777
    %v779 = vadd.f32 %v778, 1.0
    %v780 = vmul.f32 %v779, 0.5
    %781 = vxpose.xlu0.b32.start [1/16] %v388, 128
    %782 = vxpose.xlu0.b32.cont [2/16] %v389, 128
    %783 = vxpose.xlu0.b32.cont [3/16] 0.0, 128
    %784 = vxpose.xlu0.b32.cont [4/16] 0.0, 128
    %785 = vxpose.xlu0.b32.cont [5/16] 0.0, 128
    %786 = vxpose.xlu0.b32.cont [6/16] 0.0, 128
    %787 = vxpose.xlu0.b32.cont [7/16] 0.0, 128
    %788 = vxpose.xlu0.b32.cont [8/16] 0.0, 128
    %789 = vxpose.xlu0.b32.cont [9/16] 0.0, 128
    %790 = vxpose.xlu0.b32.cont [10/16] 0.0, 128
    %791 = vxpose.xlu0.b32.cont [11/16] 0.0, 128
    %792 = vxpose.xlu0.b32.cont [12/16] 0.0, 128
    %793 = vxpose.xlu0.b32.cont [13/16] 0.0, 128
    %794 = vxpose.xlu0.b32.cont [14/16] 0.0, 128
    %795 = vxpose.xlu0.b32.cont [15/16] 0.0, 128
    %796 = vxpose.xlu0.b32.end [16/16] 0.0, 128
    %v797 = vpop.trf.xlu0
    %v798 = vpop.trf.xlu0
    %v799 = vpop.trf.xlu0
    %v800 = vpop.trf.xlu0
    %v801 = vpop.trf.xlu0
    %v802 = vpop.trf.xlu0
    %v803 = vpop.trf.xlu0
    %v804 = vpop.trf.xlu0
    %v805 = vpop.trf.xlu0
    %v806 = vpop.trf.xlu0
    %v807 = vpop.trf.xlu0
    %v808 = vpop.trf.xlu0
    %v809 = vpop.trf.xlu0
    %v810 = vpop.trf.xlu0
    %v811 = vpop.trf.xlu0
    %v812 = vpop.trf.xlu0
    %v814 = vsel %vm426, %v797, 0
    %v817 = vsel %vm426, %v798, 0
    %v820 = vsel %vm426, %v799, 0
    %v823 = vsel %vm426, %v800, 0
    %825 = vmatprep.subr.mxu0 0.0
    %826 = vmatpush1.msra.mxu0 %v30
    %827 = vmatprep.subr.mxu0 0.0
    %828 = vmatpush1.msra.mxu0 %v31
    %829 = vmatprep.subr.mxu0 0.0
    %830 = vmatpush1.msra.mxu0 0.0
    %831 = vmatprep.subr.mxu0 0.0
    %832 = vmatpush1.msra.mxu0 0.0
    %833 = vmatprep.subr.mxu0 0.0
    %834 = vmatpush1.msra.mxu0 0.0
    %835 = vmatprep.subr.mxu0 0.0
    %836 = vmatpush1.msra.mxu0 0.0
    %837 = vmatprep.subr.mxu0 0.0
    %838 = vmatpush1.msra.mxu0 0.0
    %839 = vmatprep.subr.mxu0 0.0
    %840 = vmatpush1.msra.mxu0 0.0
    %841 = vmatprep.subr.mxu0 0.0
    %842 = vmatpush1.msra.mxu0 0.0
    %843 = vmatprep.subr.mxu0 0.0
    %844 = vmatpush1.msra.mxu0 0.0
    %845 = vmatprep.subr.mxu0 0.0
    %846 = vmatpush1.msra.mxu0 0.0
    %847 = vmatprep.subr.mxu0 0.0
    %848 = vmatpush1.msra.mxu0 0.0
    %849 = vmatprep.subr.mxu0 0.0
    %850 = vmatpush1.msra.mxu0 0.0
    %851 = vmatprep.subr.mxu0 0.0
    %852 = vmatpush1.msra.mxu0 0.0
    %853 = vmatprep.subr.mxu0 0.0
    %854 = vmatpush1.msra.mxu0 0.0
    %855 = vmatprep.subr.mxu0 0.0
    %856 = vmatpush1.msra.mxu0 0.0
    %857 = vmatprep.subr.mxu0 0.0
    %858 = vmatpush1.msra.mxu0 0.0
    %859 = vmatprep.subr.mxu0 0.0
    %860 = vmatpush1.msra.mxu0 0.0
    %861 = vmatprep.subr.mxu0 0.0
    %862 = vmatpush1.msra.mxu0 0.0
    %863 = vmatprep.subr.mxu0 0.0
    %864 = vmatpush1.msra.mxu0 0.0
    %865 = vmatprep.subr.mxu0 0.0
    %866 = vmatpush1.msra.mxu0 0.0
    %867 = vmatprep.subr.mxu0 0.0
    %868 = vmatpush1.msra.mxu0 0.0
    %869 = vmatprep.subr.mxu0 0.0
    %870 = vmatpush1.msra.mxu0 0.0
    %871 = vmatprep.subr.mxu0 0.0
    %872 = vmatpush1.msra.mxu0 0.0
    %873 = vmatprep.subr.mxu0 0.0
    %874 = vmatpush1.msra.mxu0 0.0
    %875 = vmatprep.subr.mxu0 0.0
    %876 = vmatpush1.msra.mxu0 0.0
    %877 = vmatprep.subr.mxu0 0.0
    %878 = vmatpush1.msra.mxu0 0.0
    %879 = vmatprep.subr.mxu0 0.0
    %880 = vmatpush1.msra.mxu0 0.0
    %881 = vmatprep.subr.mxu0 0.0
    %882 = vmatpush1.msra.mxu0 0.0
    %883 = vmatprep.subr.mxu0 0.0
    %884 = vmatpush1.msra.mxu0 0.0
    %885 = vmatprep.subr.mxu0 0.0
    %886 = vmatpush1.msra.mxu0 0.0
    %887 = vmatprep.subr.mxu0 0.0
    %888 = vmatpush1.msra.mxu0 0.0
    %889 = vmatprep.mubr.f32.mxu0 0.0
    %890 = vmatmul.mubr.f32.gmra.mrb[0].mxu0 %v814
    %v891 = vpop.f32.mrb[0].mxu0
    %v892 = vadd.f32 %v393, %v891
    %v893 = vpop.f32.mrb[0].mxu0
    %894 = vmatprep.mubr.f32.mxu0 0.0
    %895 = vmatmul.mubr.f32.gmra.mrb[0].mxu0 %v817
    %v896 = vpop.f32.mrb[0].mxu0
    %v897 = vadd.f32 %v393, %v896
    %v898 = vpop.f32.mrb[0].mxu0
    %899 = vmatprep.mubr.f32.mxu0 0.0
    %900 = vmatmul.mubr.f32.gmra.mrb[0].mxu0 %v820
    %v901 = vpop.f32.mrb[0].mxu0
    %v902 = vadd.f32 %v393, %v901
    %v903 = vpop.f32.mrb[0].mxu0
    %904 = vmatprep.mubr.f32.mxu0 0.0
    %905 = vmatmul.mubr.f32.gmra.mrb[0].mxu0 %v823
    %v906 = vpop.f32.mrb[0].mxu0
    %v907 = vadd.f32 %v393, %v906
    %v908 = vpop.f32.mrb[0].mxu0
    %909 = vdwg.mxu0
    %v910 = vlaneseq
    %v911 = vshrl.u32 %v910, 7
    %v912 = vsub.s32 1, %v911
    %v913 = vrot.slane %v245, %v912
    %v914 = vadd.f32 %v892, %v913
    %v915 = vadd.f32 %v897, %v913
    %v916 = vadd.f32 %v902, %v913
    %v917 = vadd.f32 %v907, %v913
    %918 = vxpose.xlu0.b32.start [1/16] %v914, 128
    %919 = vxpose.xlu0.b32.cont [2/16] %v915, 128
    %920 = vxpose.xlu0.b32.cont [3/16] %v916, 128
    %921 = vxpose.xlu0.b32.cont [4/16] %v917, 128
    %922 = vxpose.xlu0.b32.cont [5/16] 0.0, 128
    %923 = vxpose.xlu0.b32.cont [6/16] 0.0, 128
    %924 = vxpose.xlu0.b32.cont [7/16] 0.0, 128
    %925 = vxpose.xlu0.b32.cont [8/16] 0.0, 128
    %926 = vxpose.xlu0.b32.cont [9/16] 0.0, 128
    %927 = vxpose.xlu0.b32.cont [10/16] 0.0, 128
    %928 = vxpose.xlu0.b32.cont [11/16] 0.0, 128
    %929 = vxpose.xlu0.b32.cont [12/16] 0.0, 128
    %930 = vxpose.xlu0.b32.cont [13/16] 0.0, 128
    %931 = vxpose.xlu0.b32.cont [14/16] 0.0, 128
    %932 = vxpose.xlu0.b32.cont [15/16] 0.0, 128
    %933 = vxpose.xlu0.b32.end [16/16] 0.0, 128
    %v934 = vpop.trf.xlu0
    %v935 = vpop.trf.xlu0
    %v936 = vpop.trf.xlu0
    %v937 = vpop.trf.xlu0
    %v938 = vpop.trf.xlu0
    %v939 = vpop.trf.xlu0
    %v940 = vpop.trf.xlu0
    %v941 = vpop.trf.xlu0
    %v942 = vpop.trf.xlu0
    %v943 = vpop.trf.xlu0
    %v944 = vpop.trf.xlu0
    %v945 = vpop.trf.xlu0
    %v946 = vpop.trf.xlu0
    %v947 = vpop.trf.xlu0
    %v948 = vpop.trf.xlu0
    %v949 = vpop.trf.xlu0
    %v951 = vsel %vm54, %v934, 0
    %v954 = vsel %vm54, %v935, 0
    %v957 = vsel %vm54, %v936, 0
    %v960 = vsel %vm54, %v937, 0
    %962 = vmatprep.subr.mxu0 0.0
    %963 = vmatpush1.msra.mxu0 %v32
    %964 = vmatprep.subr.mxu0 0.0
    %965 = vmatpush1.msra.mxu0 %v33
    %966 = vmatprep.subr.mxu0 0.0
    %967 = vmatpush1.msra.mxu0 %v34
    %968 = vmatprep.subr.mxu0 0.0
    %969 = vmatpush1.msra.mxu0 %v35
    %970 = vmatprep.subr.mxu0 0.0
    %971 = vmatpush1.msra.mxu0 0.0
    %972 = vmatprep.subr.mxu0 0.0
    %973 = vmatpush1.msra.mxu0 0.0
    %974 = vmatprep.subr.mxu0 0.0
    %975 = vmatpush1.msra.mxu0 0.0
    %976 = vmatprep.subr.mxu0 0.0
    %977 = vmatpush1.msra.mxu0 0.0
    %978 = vmatprep.subr.mxu0 0.0
    %979 = vmatpush1.msra.mxu0 0.0
    %980 = vmatprep.subr.mxu0 0.0
    %981 = vmatpush1.msra.mxu0 0.0
    %982 = vmatprep.subr.mxu0 0.0
    %983 = vmatpush1.msra.mxu0 0.0
    %984 = vmatprep.subr.mxu0 0.0
    %985 = vmatpush1.msra.mxu0 0.0
    %986 = vmatprep.subr.mxu0 0.0
    %987 = vmatpush1.msra.mxu0 0.0
    %988 = vmatprep.subr.mxu0 0.0
    %989 = vmatpush1.msra.mxu0 0.0
    %990 = vmatprep.subr.mxu0 0.0
    %991 = vmatpush1.msra.mxu0 0.0
    %992 = vmatprep.subr.mxu0 0.0
    %993 = vmatpush1.msra.mxu0 0.0
    %994 = vmatprep.subr.mxu0 0.0
    %995 = vmatpush1.msra.mxu0 0.0
    %996 = vmatprep.subr.mxu0 0.0
    %997 = vmatpush1.msra.mxu0 0.0
    %998 = vmatprep.subr.mxu0 0.0
    %999 = vmatpush1.msra.mxu0 0.0
    %1000 = vmatprep.subr.mxu0 0.0
    %1001 = vmatpush1.msra.mxu0 0.0
    %1002 = vmatprep.subr.mxu0 0.0
    %1003 = vmatpush1.msra.mxu0 0.0
    %1004 = vmatprep.subr.mxu0 0.0
    %1005 = vmatpush1.msra.mxu0 0.0
    %1006 = vmatprep.subr.mxu0 0.0
    %1007 = vmatpush1.msra.mxu0 0.0
    %1008 = vmatprep.subr.mxu0 0.0
    %1009 = vmatpush1.msra.mxu0 0.0
    %1010 = vmatprep.subr.mxu0 0.0
    %1011 = vmatpush1.msra.mxu0 0.0
    %1012 = vmatprep.subr.mxu0 0.0
    %1013 = vmatpush1.msra.mxu0 0.0
    %1014 = vmatprep.subr.mxu0 0.0
    %1015 = vmatpush1.msra.mxu0 0.0
    %1016 = vmatprep.subr.mxu0 0.0
    %1017 = vmatpush1.msra.mxu0 0.0
    %1018 = vmatprep.subr.mxu0 0.0
    %1019 = vmatpush1.msra.mxu0 0.0
    %1020 = vmatprep.subr.mxu0 0.0
    %1021 = vmatpush1.msra.mxu0 0.0
    %1022 = vmatprep.subr.mxu0 0.0
    %1023 = vmatpush1.msra.mxu0 0.0
    %1024 = vmatprep.subr.mxu0 0.0
    %1025 = vmatpush1.msra.mxu0 0.0
    %1026 = vmatprep.mubr.f32.mxu0 0.0
    %1027 = vmatmul.mubr.f32.gmra.mrb[0].mxu0 %v951
    %v1028 = vpop.f32.mrb[0].mxu0
    %v1029 = vadd.f32 %v535, %v1028
    %v1030 = vpop.f32.mrb[0].mxu0
    %1031 = vmatprep.mubr.f32.mxu0 0.0
    %1032 = vmatmul.mubr.f32.gmra.mrb[0].mxu0 %v954
    %v1033 = vpop.f32.mrb[0].mxu0
    %v1034 = vadd.f32 %v535, %v1033
    %v1035 = vpop.f32.mrb[0].mxu0
    %1036 = vmatprep.mubr.f32.mxu0 0.0
    %1037 = vmatmul.mubr.f32.gmra.mrb[0].mxu0 %v957
    %v1038 = vpop.f32.mrb[0].mxu0
    %v1039 = vadd.f32 %v535, %v1038
    %v1040 = vpop.f32.mrb[0].mxu0
    %1041 = vmatprep.mubr.f32.mxu0 0.0
    %1042 = vmatmul.mubr.f32.gmra.mrb[0].mxu0 %v960
    %v1043 = vpop.f32.mrb[0].mxu0
    %v1044 = vadd.f32 %v535, %v1043
    %v1045 = vpop.f32.mrb[0].mxu0
    %1046 = vdwg.mxu0
    %v1047 = vmul.f32 %v1029, 0.5
    %v1048 = vmul.f32 %v1034, 0.5
    %v1049 = vmul.f32 %v1039, 0.5
    %v1050 = vmul.f32 %v1044, 0.5
    %v1051 = vmul.f32 %v1029, %v1029
    %v1052 = vmul.f32 %v1034, %v1034
    %v1053 = vmul.f32 %v1039, %v1039
    %v1054 = vmul.f32 %v1044, %v1044
    %v1055 = vmul.f32 %v1051, %v1029
    %v1056 = vmul.f32 %v1052, %v1034
    %v1057 = vmul.f32 %v1053, %v1039
    %v1058 = vmul.f32 %v1054, %v1044
    %v1059 = vmul.f32 %v1055, 0.044715
    %v1060 = vmul.f32 %v1056, 0.044715
    %v1061 = vmul.f32 %v1057, 0.044715
    %v1062 = vmul.f32 %v1058, 0.044715
    %v1063 = vadd.f32 %v1029, %v1059
    %v1064 = vadd.f32 %v1034, %v1060
    %v1065 = vadd.f32 %v1039, %v1061
    %v1066 = vadd.f32 %v1044, %v1062
    %v1067 = vmul.f32 %v1063, 0.7978846
    %v1068 = vmul.f32 %v1064, 0.7978846
    %v1069 = vmul.f32 %v1065, 0.7978846
    %v1070 = vmul.f32 %v1066, 0.7978846
    %v1071 = vtanh.pop %v1067
    %v1072 = vtanh.pop %v1068
    %v1073 = vtanh.pop %v1069
    %v1074 = vtanh.pop %v1070
    %v1075 = vadd.f32 %v1071, 1.0
    %v1076 = vadd.f32 %v1072, 1.0
    %v1077 = vadd.f32 %v1073, 1.0
    %v1078 = vadd.f32 %v1074, 1.0
    %v1079 = vmul.f32 %v1047, %v1075
    %v1080 = vmul.f32 %v1048, %v1076
    %v1081 = vmul.f32 %v1049, %v1077
    %v1082 = vmul.f32 %v1050, %v1078
    %v1083 = vrot.slane %v49, 3
    %1085 = vmatprep.subr.mxu0 0.0
    %1086 = vmatpush1.msra.mxu0 %v1079
    %1087 = vmatprep.subr.mxu0 0.0
    %1088 = vmatpush1.msra.mxu0 %v1080
    %1089 = vmatprep.subr.mxu0 0.0
    %1090 = vmatpush1.msra.mxu0 %v1081
    %1091 = vmatprep.subr.mxu0 0.0
    %1092 = vmatpush1.msra.mxu0 %v1082
    %1093 = vmatprep.subr.mxu0 0.0
    %1094 = vmatpush1.msra.mxu0 0.0
    %1095 = vmatprep.subr.mxu0 0.0
    %1096 = vmatpush1.msra.mxu0 0.0
    %1097 = vmatprep.subr.mxu0 0.0
    %1098 = vmatpush1.msra.mxu0 0.0
    %1099 = vmatprep.subr.mxu0 0.0
    %1100 = vmatpush1.msra.mxu0 0.0
    %1101 = vmatprep.subr.mxu0 0.0
    %1102 = vmatpush1.msra.mxu0 0.0
    %1103 = vmatprep.subr.mxu0 0.0
    %1104 = vmatpush1.msra.mxu0 0.0
    %1105 = vmatprep.subr.mxu0 0.0
    %1106 = vmatpush1.msra.mxu0 0.0
    %1107 = vmatprep.subr.mxu0 0.0
    %1108 = vmatpush1.msra.mxu0 0.0
    %1109 = vmatprep.subr.mxu0 0.0
    %1110 = vmatpush1.msra.mxu0 0.0
    %1111 = vmatprep.subr.mxu0 0.0
    %1112 = vmatpush1.msra.mxu0 0.0
    %1113 = vmatprep.subr.mxu0 0.0
    %1114 = vmatpush1.msra.mxu0 0.0
    %1115 = vmatprep.subr.mxu0 0.0
    %1116 = vmatpush1.msra.mxu0 0.0
    %1117 = vmatprep.subr.mxu0 0.0
    %1118 = vmatpush1.msra.mxu0 0.0
    %1119 = vmatprep.subr.mxu0 0.0
    %1120 = vmatpush1.msra.mxu0 0.0
    %1121 = vmatprep.subr.mxu0 0.0
    %1122 = vmatpush1.msra.mxu0 0.0
    %1123 = vmatprep.subr.mxu0 0.0
    %1124 = vmatpush1.msra.mxu0 0.0
    %1125 = vmatprep.subr.mxu0 0.0
    %1126 = vmatpush1.msra.mxu0 0.0
    %1127 = vmatprep.subr.mxu0 0.0
    %1128 = vmatpush1.msra.mxu0 0.0
    %1129 = vmatprep.subr.mxu0 0.0
    %1130 = vmatpush1.msra.mxu0 0.0
    %1131 = vmatprep.subr.mxu0 0.0
    %1132 = vmatpush1.msra.mxu0 0.0
    %1133 = vmatprep.subr.mxu0 0.0
    %1134 = vmatpush1.msra.mxu0 0.0
    %1135 = vmatprep.subr.mxu0 0.0
    %1136 = vmatpush1.msra.mxu0 0.0
    %1137 = vmatprep.subr.mxu0 0.0
    %1138 = vmatpush1.msra.mxu0 0.0
    %1139 = vmatprep.subr.mxu0 0.0
    %1140 = vmatpush1.msra.mxu0 0.0
    %1141 = vmatprep.subr.mxu0 0.0
    %1142 = vmatpush1.msra.mxu0 0.0
    %1143 = vmatprep.subr.mxu0 0.0
    %1144 = vmatpush1.msra.mxu0 0.0
    %1145 = vmatprep.subr.mxu0 0.0
    %1146 = vmatpush1.msra.mxu0 0.0
    %1147 = vmatprep.subr.mxu0 0.0
    %1148 = vmatpush1.msra.mxu0 0.0
    %1149 = vmatprep.mubr.f32.mxu0 0.0
    %1150 = vmatmul.mubr.f32.gmra.mrb[0].mxu0 %v705
    %v1151 = vpop.f32.mrb[0].mxu0
    %v1152 = vadd.f32 %v1083, %v1151
    %v1153 = vpop.f32.mrb[0].mxu0
    %1154 = vdwg.mxu0
    %v1155 = vmul.f32 %v1152, 0.5
    %v1156 = vtanh.pop %v1155
    %v1157 = vadd.f32 %v1156, 1.0
    %v1158 = vmul.f32 %v1157, 0.5
    %v1160 = vrot.slane %v1158, 7
    %vm1162 = vcmask 1040384
    %v1163 = vsel %vm1162, %v780, %v1160
    %vm1164 = vcmask 254976
    %1165 = vst.msk [vmem:[#allocation5] sm:$0x3] %vm1164, %v1163
    // Predicated region
    $region18: #{channel_transformer_transmitter_forward.1} parent=1 // pred_check
      _
    $region19: #{channel_transformer_transmitter_forward.1} parent=1 // pred_check_branch
      %1167 = sbr.rel (0) target = $region21
    $region20: #{channel_transformer_transmitter_forward.1} parent=1 // pred_region
      %s1169 = ssub.s32 32, 32
      %1170 = vsyncadd [#allocation4], %s1169
      %s1172 = sshll.u32 [#allocation5], 4
      %s1173 = int_to_ptr.vmem [resolvable:$true] %s1172
      %1175 = dma.vmem_to_hbm [thread:$0]  %s1173, 32, %s3, [#allocation4]
    $region21: #{channel_transformer_transmitter_forward.1} parent=1 // pred_fallthru
      _
    // Predicated region
    $region22: #{channel_transformer_transmitter_forward.1} parent=1 // pred_check
      _
    $region23: #{channel_transformer_transmitter_forward.1} parent=1 // pred_check_branch
      %1177 = sbr.rel (0) target = $region25
    $region24: #{channel_transformer_transmitter_forward.1} parent=1 // pred_region
      %1178 = dma.done [#allocation4], 32
    $region25: #{channel_transformer_transmitter_forward.1} parent=1 // pred_fallthru
      _
    %1179 = vsyncpa [#allocation3], 1
    %1180 = vsyncpa [#allocation4], 1

</llo_original>
